<compile_context>
chip_gen: v7x
topology: tpu7x:2x2x1
jax: 0.10.0
libtpu: 0.0.40
codegen_flags: <defaults>
</compile_context>

<pallas_src>
import functools
import math

import jax
import jax.numpy as jnp
from jax import lax
from jax.experimental import pallas as pl
from jax.experimental.pallas import tpu as pltpu


def _head_kernel(x_ref, wb_ref, bb_ref, o_ref, *, eps):
    # x_ref:  (TL, C)      L-tile of one batch element (any float dtype)
    # wb_ref: (C, O_pad)   per-batch modulation-folded weight, bf16, VMEM-resident
    # bb_ref: (1, O_pad)   per-batch folded bias, fp32, VMEM-resident
    # o_ref:  (TL, O_pad)  output tile
    x = x_ref[...].astype(jnp.float32)                      # [TL, C]

    # Two-pass LayerNorm statistics (torch semantics, biased variance).
    mean = jnp.mean(x, axis=-1, keepdims=True)              # [TL, 1]
    xc = x - mean                                           # [TL, C]
    var = jnp.mean(xc * xc, axis=-1, keepdims=True)         # [TL, 1]
    xn = xc * lax.rsqrt(var + eps)                          # [TL, C]

    # Modulation already folded into wb/bb:  out = xn @ W_b + bias_b
    out = jnp.dot(xn.astype(wb_ref.dtype), wb_ref[...],
                  preferred_element_type=jnp.float32)       # [TL, O_pad]
    o_ref[...] = (out + bb_ref[...]).astype(o_ref.dtype)


def prepare_head_params(weight, bias):
    """One-time parameter prep (do at init, not per forward).

    weight: [O, C] torch nn.Linear layout, bias: [O].
    Returns (w_t_pad [C, O_pad] fp32, b_pad [O_pad] fp32, O).
    """
    O, C = weight.shape
    O_pad = max(128, ((O + 127) // 128) * 128)
    w_t_pad = jnp.zeros((C, O_pad), jnp.float32).at[:, :O].set(
        weight.T.astype(jnp.float32))
    b_pad = jnp.zeros((O_pad,), jnp.float32).at[:O].set(bias.astype(jnp.float32))
    return w_t_pad, b_pad, O


def _vmem_capacity_bytes():
    try:
        return int(pltpu.get_tpu_info().vmem_capacity_bytes)
    except Exception:
        return 64 * 1024 * 1024  # conservative (v7x per-TC size)


def head_forward(x, e, modulation, w_t_pad, b_pad, *, eps=1e-6,
                 out_dtype=jnp.float32, tl_cap=1024):
    """x: [B, L, C] (fp32 or bf16), e: [B, C], modulation: [1, 2, C],
    w_t_pad: [C, O_pad] fp32 (from prepare_head_params), b_pad: [O_pad] fp32.

    Returns the lane-dense padded output [B, L, O_pad] (dtype out_dtype); the
    consumer (unpatchify) should use only the first O columns.
    """
    B, L, C = x.shape
    O_pad = w_t_pad.shape[1]

    # ---- Fold modulation into per-batch weight / bias (tiny vs. x traffic) ----
    e = e.astype(jnp.float32)
    mod = modulation.reshape(2, C).astype(jnp.float32)
    e0 = mod[0][None, :] + e                                        # [B, C]
    e1 = mod[1][None, :] + e                                        # [B, C]
    w_b = ((1.0 + e1)[:, :, None] * w_t_pad[None, :, :]).astype(jnp.bfloat16)
    bias_b = (e0 @ w_t_pad + b_pad[None, :]).reshape(B, 1, O_pad)   # fp32

    # ---- Generation-aware L-tile sizing from the real VMEM capacity ----------
    x_bytes = jnp.dtype(x.dtype).itemsize
    out_bytes = jnp.dtype(out_dtype).itemsize
    vmem_physical = _vmem_capacity_bytes()
    # Budget for kernel buffers: leave Mosaic-internal headroom, cap ~110 MiB.
    budget = min(vmem_physical - 12 * 1024 * 1024, 110 * 1024 * 1024)

    resident = 2 * (C * O_pad * 2 + O_pad * 4)          # double-buffered W_b / bias_b
    per_row = (C * (2 * x_bytes + 12)                   # x dbl-buf + ~3 fp32 temporaries
               + 2 * out_bytes * O_pad)                 # out double buffer
    tl_fit = max(budget - resident, 0) // per_row

    if tl_fit >= L:
        tl = L                                          # full axis: exempt from (8,128) rule
    else:
        tl = min(tl_cap, int(tl_fit))
        if tl >= 256:
            tl -= tl % 256                              # unmasked DMA / vst, megacore balance
        else:
            tl -= tl % 16                               # bf16 sublane packing
        tl = max(tl, 16)
        tl = min(tl, L)
    grid = (B, pl.cdiv(L, tl))

    vmem_need = tl * per_row + resident + 4 * 1024 * 1024  # + internal scratch headroom
    vmem_limit = int(min(max((vmem_need * 5) // 4, 32 * 1024 * 1024),
                         min(vmem_physical - 8 * 1024 * 1024, 112 * 1024 * 1024)))

    kernel = functools.partial(_head_kernel, eps=eps)

    out_pad = pl.pallas_call(
        kernel,
        out_shape=jax.ShapeDtypeStruct((B, L, O_pad), out_dtype),
        grid_spec=pltpu.PrefetchScalarGridSpec(
            num_scalar_prefetch=0,
            grid=grid,
            in_specs=[
                pl.BlockSpec((None, tl, C), lambda b, l: (b, l, 0)),      # x tile
                pl.BlockSpec((None, C, O_pad), lambda b, l: (b, 0, 0)),   # W_b (per batch)
                pl.BlockSpec((None, 1, O_pad), lambda b, l: (b, 0, 0)),   # bias_b (per batch)
            ],
            out_specs=pl.BlockSpec((None, tl, O_pad), lambda b, l: (b, l, 0)),
        ),
        compiler_params=pltpu.CompilerParams(
            dimension_semantics=("parallel", "parallel"),
            vmem_limit_bytes=vmem_limit,
        ),
    )(x, w_b, bias_b)

    return out_pad  # [B, L, O_pad]; consumer uses [..., :O]


def head_reference(x, e, modulation, weight_t, bias, *, eps=1e-6):
    """Pure-JAX fp32 reference of the torch forward (e.dim() == 2 path)."""
    x = x.astype(jnp.float32)
    e = e.astype(jnp.float32)
    e_sum = modulation + e[:, None, :]       # [B, 2, C]
    e0 = e_sum[:, 0, :]
    e1 = e_sum[:, 1, :]
    mean = jnp.mean(x, axis=-1, keepdims=True)
    var = jnp.mean((x - mean) ** 2, axis=-1, keepdims=True)
    xn = (x - mean) * lax.rsqrt(var + eps)
    h = xn * (1 + e1[:, None, :]) + e0[:, None, :]
    return jnp.einsum("blc,co->blo", h, weight_t) + bias[None, None, :]


if __name__ == "__main__":
    # Small shapes consistent with the module.
    B, L, C = 2, 8, 32
    out_dim = 4
    patch_size = (1, 2, 2)
    O = math.prod(patch_size) * out_dim      # 16
    eps = 1e-6

    key = jax.random.PRNGKey(0)
    kx, ke, kmod, kw, kb = jax.random.split(key, 5)

    x = jax.random.normal(kx, (B, L, C), dtype=jnp.float32)
    e = jax.random.normal(ke, (B, C), dtype=jnp.float32)

    # Deterministic synthetic parameters (shapes match torch __init__).
    modulation = jax.random.normal(kmod, (1, 2, C), dtype=jnp.float32) / (C ** 0.5)
    bound = 1.0 / (C ** 0.5)
    weight = jax.random.uniform(kw, (O, C), minval=-bound, maxval=bound,
                                dtype=jnp.float32)       # torch nn.Linear layout [O, C]
    bias = jax.random.uniform(kb, (O,), minval=-bound, maxval=bound,
                              dtype=jnp.float32)

    # One-time parameter preparation (init-time, not per forward).
    w_t_pad, b_pad, O_valid = prepare_head_params(weight, bias)

    out_pad = head_forward(x, e, modulation, w_t_pad, b_pad, eps=eps)
    out_pad = jax.block_until_ready(out_pad)
    out = out_pad[..., :O_valid]   # test-only slice; production consumer fuses it

    ref = head_reference(x, e, modulation, weight.T, bias, eps=eps)
    assert out.shape == (B, L, O)
    max_err = float(jnp.max(jnp.abs(out - ref)))
    assert jnp.allclose(out, ref, atol=5e-2, rtol=5e-2), (
        f"mismatch vs reference (max abs err {max_err})")
    # Padded columns must be exactly the padded bias contribution of zeros -> 0.
    assert float(jnp.max(jnp.abs(out_pad[..., O_valid:]))) < 1e-3

    print("KERNEL_OK")
</pallas_src>

<mosaic_0001>
module attributes {stable_mosaic.version = 11 : i64} {
  func.func @_head_kernel(%arg0: i32, %arg1: i32, %arg2: memref<1x8x32xf32, #tpu.memory_space<vmem>>, %arg3: memref<1x32x128xbf16, #tpu.memory_space<vmem>>, %arg4: memref<1x1x128xf32, #tpu.memory_space<vmem>>, %arg5: memref<1x8x128xf32, #tpu.memory_space<vmem>>) attributes {dimension_semantics = [#tpu.dimension_semantics<parallel>, #tpu.dimension_semantics<parallel>], iteration_bounds = array<i64: 2, 1>, scalar_prefetch = 0 : i64, scratch_operands = 0 : i64, tpu.core_type = #tpu.core_type<tc>, window_params = [{transform_indices = @transform_0, window_bounds = array<i64: 1, 8, 32>}, {transform_indices = @transform_1, window_bounds = array<i64: 1, 32, 128>}, {transform_indices = @transform_2, window_bounds = array<i64: 1, 1, 128>}, {transform_indices = @transform_3, window_bounds = array<i64: 1, 8, 128>}]} {
    %c0 = arith.constant 0 : index
    %c0_0 = arith.constant 0 : index
    %c0_1 = arith.constant 0 : index
    %0 = vector.load %arg2[%c0, %c0_0, %c0_1] : memref<1x8x32xf32, #tpu.memory_space<vmem>>, vector<1x8x32xf32>
    %1 = vector.shape_cast %0 : vector<1x8x32xf32> to vector<8x32xf32>
    %cst = arith.constant dense<0.000000e+00> : vector<8xf32>
    %2 = vector.multi_reduction <add>, %1, %cst [1] : vector<8x32xf32> to vector<8xf32>
    %3 = vector.shape_cast %2 : vector<8xf32> to vector<8x1xf32>
    %cst_2 = arith.constant 3.200000e+01 : f32
    %4 = vector.broadcast %cst_2 : f32 to vector<8x1xf32>
    %5 = arith.divf %3, %4 : vector<8x1xf32>
    %6 = vector.broadcast %5 : vector<8x1xf32> to vector<8x32xf32>
    %7 = arith.subf %1, %6 : vector<8x32xf32>
    %8 = arith.mulf %7, %7 : vector<8x32xf32>
    %cst_3 = arith.constant dense<0.000000e+00> : vector<8xf32>
    %9 = vector.multi_reduction <add>, %8, %cst_3 [1] : vector<8x32xf32> to vector<8xf32>
    %10 = vector.shape_cast %9 : vector<8xf32> to vector<8x1xf32>
    %cst_4 = arith.constant 3.200000e+01 : f32
    %11 = vector.broadcast %cst_4 : f32 to vector<8x1xf32>
    %12 = arith.divf %10, %11 : vector<8x1xf32>
    %cst_5 = arith.constant 9.99999997E-7 : f32
    %13 = vector.broadcast %cst_5 : f32 to vector<8x1xf32>
    %14 = arith.addf %12, %13 : vector<8x1xf32>
    %15 = math.rsqrt %14 : vector<8x1xf32>
    %16 = vector.broadcast %15 : vector<8x1xf32> to vector<8x32xf32>
    %17 = arith.mulf %7, %16 : vector<8x32xf32>
    %18 = arith.truncf %17 : vector<8x32xf32> to vector<8x32xbf16>
    %c0_6 = arith.constant 0 : index
    %c0_7 = arith.constant 0 : index
    %c0_8 = arith.constant 0 : index
    %19 = vector.load %arg3[%c0_6, %c0_7, %c0_8] : memref<1x32x128xbf16, #tpu.memory_space<vmem>>, vector<1x32x128xbf16>
    %20 = vector.shape_cast %19 : vector<1x32x128xbf16> to vector<32x128xbf16>
    %cst_9 = arith.constant dense<0.000000e+00> : vector<8x128xf32>
    %21 = tpu.matmul %18, %20, %cst_9 {dimension_numbers = #tpu.dot_dimension_numbers<[1], [0], [0], [1], [0, 0, 1, 1], [], []>} : vector<8x32xbf16>, vector<32x128xbf16>, vector<8x128xf32> -> vector<8x128xf32>
    %c0_10 = arith.constant 0 : index
    %c0_11 = arith.constant 0 : index
    %c0_12 = arith.constant 0 : index
    %22 = vector.load %arg4[%c0_10, %c0_11, %c0_12] : memref<1x1x128xf32, #tpu.memory_space<vmem>>, vector<1x1x128xf32>
    %23 = vector.shape_cast %22 : vector<1x1x128xf32> to vector<1x128xf32>
    %24 = vector.broadcast %23 : vector<1x128xf32> to vector<8x128xf32>
    %25 = arith.addf %21, %24 : vector<8x128xf32>
    %c0_13 = arith.constant 0 : index
    %c0_14 = arith.constant 0 : index
    %c0_15 = arith.constant 0 : index
    %26 = vector.load %arg5[%c0_13, %c0_14, %c0_15] : memref<1x8x128xf32, #tpu.memory_space<vmem>>, vector<1x8x128xf32>
    %27 = vector.shape_cast %26 : vector<1x8x128xf32> to vector<8x128xf32>
    %28 = vector.shape_cast %25 : vector<8x128xf32> to vector<1x8x128xf32>
    tpu.vector_store %arg5[%c0_13, %c0_14, %c0_15], %28 {strides = array<i32>} : memref<1x8x128xf32, #tpu.memory_space<vmem>>, vector<1x8x128xf32>,
    return
  }
  func.func @transform_0(%arg0: i32, %arg1: i32) -> (i32, i32, i32) {
    %c0_i32 = arith.constant 0 : i32
    %c0_i32_0 = arith.constant 0 : i32
    return %arg0, %arg1, %c0_i32 : i32, i32, i32
  }
  func.func @transform_1(%arg0: i32, %arg1: i32) -> (i32, i32, i32) {
    %c0_i32 = arith.constant 0 : i32
    %c0_i32_0 = arith.constant 0 : i32
    %c0_i32_1 = arith.constant 0 : i32
    return %arg0, %c0_i32, %c0_i32_0 : i32, i32, i32
  }
  func.func @transform_2(%arg0: i32, %arg1: i32) -> (i32, i32, i32) {
    %c0_i32 = arith.constant 0 : i32
    %c0_i32_0 = arith.constant 0 : i32
    %c0_i32_1 = arith.constant 0 : i32
    return %arg0, %c0_i32, %c0_i32_0 : i32, i32, i32
  }
  func.func @transform_3(%arg0: i32, %arg1: i32) -> (i32, i32, i32) {
    %c0_i32 = arith.constant 0 : i32
    %c0_i32_0 = arith.constant 0 : i32
    return %arg0, %arg1, %c0_i32 : i32, i32, i32
  }
}

</mosaic_0001>

<llo_original>
// kernel: tpu_custom_call.1
$region0: #{tpu_custom_call.1}
  #allocation0 [shape = 'u32[]', space=smem, size = 0x4, offset = 0x4, fixed_abs, tag = 'smem constant byte address 0x4 - core index']
  #allocation1 [shape = 'u32[144,128]{1,0:T(1,128)}', space=vmem, size = 0x12000, scoped, tag = 'internal scratch']
  %s0 = inlined_call_operand.hbm [shape: f32[2,8,32], index: 0, kind: input, shape index: {}]
  %s1 = inlined_call_operand.hbm [shape: bf16[2,32,128], index: 1, kind: input, shape index: {}]
  %s2 = inlined_call_operand.vmem [shape: f32[2,1,128], index: 2, kind: input, shape index: {}]
  %s3 = inlined_call_operand.hbm [shape: f32[2,8,128], index: 3, kind: output, shape index: {}]
  %s4 = sld [smem:[#allocation0]]
  $region53: #{tpu_custom_call.1} parent=0
    _
  %s6 = ssub.s32 1, %s4
  %s7 = scalar_select 0, %s6, %s4
  $region1: #{tpu_custom_call.1} parent=0
    #allocation2 [shape = 'u8[8192]{0}', space=vmem, size = 0x2000, scoped, tag = 'input window, operand 0']
    #allocation3 [shape = 's32[2]{0}', space=sflag, size = 0x8, scoped, tag = 'scoped memory for tpu_custom_call.1']
    #allocation4 [shape = 's32[2]{0}', space=sflag, size = 0x8, scoped, tag = 'scoped memory for tpu_custom_call.1']
    #allocation5 [shape = 'u8[16384]{0}', space=vmem, size = 0x4000, scoped, tag = 'input window, operand 1']
    #allocation6 [shape = 's32[2]{0}', space=sflag, size = 0x8, scoped, tag = 'scoped memory for tpu_custom_call.1']
    #allocation7 [shape = 'u8[8192]{0}', space=vmem, size = 0x2000, scoped, tag = 'output window, operand 0']
    %8 = vsyncpa [#allocation3], 0
    %s9 = scalar_lea.sflag [#allocation3], 1
    %10 = vsyncpa %s9, 0
    %11 = vsyncpa [#allocation6], 0
    %s12 = scalar_lea.sflag [#allocation6], 1
    %13 = vsyncpa %s12, 0
    %14 = vsyncpa [#allocation4], 0
    %s15 = scalar_lea.sflag [#allocation4], 1
    %16 = vsyncpa %s15, 0
    loop: start=0, step=1, limit=4
    $region2: #{tpu_custom_call.1} parent=1 // loop_pre_header
      _
    $region3: #{tpu_custom_call.1} parent=1 // loop_header
      %s18 = sphi 0, %s22
      %p19 = scmp.ge.s32.totalorder %s18, 4
      %s25 = sphi 0, %s37
      %s26 = sphi 0, %s33
      %s27 = sphi 0, %s25
      %s28 = sphi 0, %s26
      %s29 = sphi 0, %s27
      %s30 = sphi 0, %s28
      %s42 = sphi 0, %s44
      %s45 = sphi 0, %s42
      %s46 = sphi 0, %s45
      %s62 = sphi 0, %s46
      %s68 = sphi 0, %s70
      %s71 = sphi 0, %s68
      %s72 = sphi 0, %s71
      %s88 = sphi 0, %s72
      %s94 = sphi 0, %s96
      %s97 = sphi 0, %s94
      %s98 = sphi 0, %s97
      %s114 = sphi 0, %s98
      %s122 = sphi 0, %s124
      %s125 = sphi 0, %s122
      %s126 = sphi 0, %s125
      %s142 = sphi 0, %s126
    $region4: #{tpu_custom_call.1} parent=1 // loop_header_branch
      %21 = sbr.rel (%p19) target = $region8
    $region5: #{tpu_custom_call.1} parent=1 // loop_body
      %s23 = ssub.s32 %s18, 1
      %s24 = ssub.s32 %s18, 2
      %s31 = sadd.s32 1, %s26
      %p32 = scmp.ge.s32.totalorder %s31, 1
      %s33 = scalar_select %p32, 0, %s31
      %s34 = sadd.s32 1, %s25
      %s35 = scalar_select %p32, %s34, %s25
      %p36 = scmp.ge.s32.totalorder %s35, 2
      %s37 = scalar_select %p36, 0, %s35
      %s38 = ssub.s32 %s25, %s37
      %s39 = ssub.s32 %s26, %s33
      %s40 = sor.u32 %s38, %s39
      %p41 = scmp.eq.s32.totalorder %s40, 0
      %s43 = sadd.s32 %s42, 1
      %s44 = scalar_select %p41, %s42, %s43
      %p47 = pneg %p41
      %p48 = scmp.eq.s32.totalorder %s18, 1
      %p49 = por %p47, %p48
      %p50 = scmp.ne.s32.totalorder %s42, %s45
      %p51 = scmp.eq.s32.totalorder %s18, 0
      %p52 = por %p50, %p51
      %p53 = scmp.ne.s32.totalorder %s42, %s45
      %p54 = scmp.eq.s32.totalorder %s23, 1
      %p55 = por %p53, %p54
      %p56 = scmp.ne.s32.totalorder %s45, %s46
      %p57 = scmp.eq.s32.totalorder %s23, 0
      %p58 = por %p56, %p57
      %p59 = scmp.ne.s32.totalorder %s45, %s46
      %p60 = scmp.eq.s32.totalorder %s24, 1
      %p61 = por %p59, %p60
      %p63 = scmp.ne.s32.totalorder %s46, %s62
      %p64 = scmp.eq.s32.totalorder %s24, 0
      %p65 = por %p63, %p64
      %s66 = ssub.s32 %s25, %s37
      %p67 = scmp.eq.s32.totalorder %s66, 0
      %s69 = sadd.s32 %s68, 1
      %s70 = scalar_select %p67, %s68, %s69
      %p73 = pneg %p67
      %p74 = scmp.eq.s32.totalorder %s18, 1
      %p75 = por %p73, %p74
      %p76 = scmp.ne.s32.totalorder %s68, %s71
      %p77 = scmp.eq.s32.totalorder %s18, 0
      %p78 = por %p76, %p77
      %p79 = scmp.ne.s32.totalorder %s68, %s71
      %p80 = scmp.eq.s32.totalorder %s23, 1
      %p81 = por %p79, %p80
      %p82 = scmp.ne.s32.totalorder %s71, %s72
      %p83 = scmp.eq.s32.totalorder %s23, 0
      %p84 = por %p82, %p83
      %p85 = scmp.ne.s32.totalorder %s71, %s72
      %p86 = scmp.eq.s32.totalorder %s24, 1
      %p87 = por %p85, %p86
      %p89 = scmp.ne.s32.totalorder %s72, %s88
      %p90 = scmp.eq.s32.totalorder %s24, 0
      %p91 = por %p89, %p90
      %s92 = ssub.s32 %s25, %s37
      %p93 = scmp.eq.s32.totalorder %s92, 0
      %s95 = sadd.s32 %s94, 1
      %s96 = scalar_select %p93, %s94, %s95
      %p99 = pneg %p93
      %p100 = scmp.eq.s32.totalorder %s18, 1
      %p101 = por %p99, %p100
      %p102 = scmp.ne.s32.totalorder %s94, %s97
      %p103 = scmp.eq.s32.totalorder %s18, 0
      %p104 = por %p102, %p103
      %p105 = scmp.ne.s32.totalorder %s94, %s97
      %p106 = scmp.eq.s32.totalorder %s23, 1
      %p107 = por %p105, %p106
      %p108 = scmp.ne.s32.totalorder %s97, %s98
      %p109 = scmp.eq.s32.totalorder %s23, 0
      %p110 = por %p108, %p109
      %p111 = scmp.ne.s32.totalorder %s97, %s98
      %p112 = scmp.eq.s32.totalorder %s24, 1
      %p113 = por %p111, %p112
      %p115 = scmp.ne.s32.totalorder %s98, %s114
      %p116 = scmp.eq.s32.totalorder %s24, 0
      %p117 = por %p115, %p116
      %s118 = ssub.s32 %s25, %s37
      %s119 = ssub.s32 %s26, %s33
      %s120 = sor.u32 %s118, %s119
      %p121 = scmp.eq.s32.totalorder %s120, 0
      %s123 = sadd.s32 %s122, 1
      %s124 = scalar_select %p121, %s122, %s123
      %p127 = pneg %p121
      %p128 = scmp.eq.s32.totalorder %s18, 1
      %p129 = por %p127, %p128
      %p130 = scmp.ne.s32.totalorder %s122, %s125
      %p131 = scmp.eq.s32.totalorder %s18, 0
      %p132 = por %p130, %p131
      %p133 = scmp.ne.s32.totalorder %s122, %s125
      %p134 = scmp.eq.s32.totalorder %s23, 1
      %p135 = por %p133, %p134
      %p136 = scmp.ne.s32.totalorder %s125, %s126
      %p137 = scmp.eq.s32.totalorder %s23, 0
      %p138 = por %p136, %p137
      %p139 = scmp.ne.s32.totalorder %s125, %s126
      %p140 = scmp.eq.s32.totalorder %s24, 1
      %p141 = por %p139, %p140
      %p143 = scmp.ne.s32.totalorder %s126, %s142
      %p144 = scmp.eq.s32.totalorder %s24, 0
      %p145 = por %p143, %p144
      %p146 = scmp.le.s32.totalorder 1, %s18
      %p147 = scmp.lt.s32.totalorder %s18, 3
      %p148 = pnand %p146, %p147
      %p149 = pneg %p148
      // Predicated region
      $region9: #{tpu_custom_call.1} parent=5 // pred_check
        _
      $region10: #{tpu_custom_call.1} parent=5 // pred_check_branch
        %151 = sbr.rel (%p148) target = $region12
      $region11: #{tpu_custom_call.1} parent=5 // pred_region
        %s152 = ssub.s32 %s18, 1
      $region12: #{tpu_custom_call.1} parent=5 // pred_fallthru
        _
      %p153 = scmp.lt.s32.totalorder %s18, 2
      // Predicated region
      $region13: #{tpu_custom_call.1} parent=5 // pred_check
        %p154 = pneg %p153
      $region14: #{tpu_custom_call.1} parent=5 // pred_check_branch
        %156 = sbr.rel (%p154) target = $region16
      $region15: #{tpu_custom_call.1} parent=5 // pred_region
        // Predicated region
        $region17: #{tpu_custom_call.1} parent=15 // pred_check
          %p157 = pneg %p52
        $region18: #{tpu_custom_call.1} parent=15 // pred_check_branch
          %159 = sbr.rel (%p157) target = $region20
        $region19: #{tpu_custom_call.1} parent=15 // pred_region
          %s160 = sand.u32 %s42, 1
          %s161 = scalar_lea.sflag [#allocation3], %s160
          %s162 = sand.u32 %s42, 1
          %s163 = smul.addr %s162, 8
          %s164 = scalar_lea.vmem [#allocation2], %s163
          %s166 = ssub.s32 128, 128
          %167 = vsyncadd %s161, %s166
          %s168 = sadd.s32 %s26, %s25
          %s169 = smul.addr %s168, 128
          %s170 = scalar_lea.hbm %s0, %s169
          %s172 = sshll.u32 %s164, 4
          %s173 = int_to_ptr.vmem [resolvable:$true] %s172
          %175 = dma.hbm_to_vmem [thread:$0]  %s170, 128, %s173, %s161
        $region20: #{tpu_custom_call.1} parent=15 // pred_fallthru
          _
        // Predicated region
        $region21: #{tpu_custom_call.1} parent=15 // pred_check
          %p176 = pneg %p78
        $region22: #{tpu_custom_call.1} parent=15 // pred_check_branch
          %178 = sbr.rel (%p176) target = $region24
        $region23: #{tpu_custom_call.1} parent=15 // pred_region
          %s179 = sand.u32 %s68, 1
          %s180 = scalar_lea.sflag [#allocation6], %s179
          %s181 = sand.u32 %s68, 1
          %s182 = smul.addr %s181, 16
          %s183 = scalar_lea.vmem [#allocation5], %s182
          %s185 = ssub.s32 256, 256
          %186 = vsyncadd %s180, %s185
          %s187 = smul.addr %s25, 4
          %s188 = smul.addr %s187, 64
          %s189 = scalar_lea.hbm %s1, %s188
          %s190 = sshll.u32 %s183, 4
          %s191 = int_to_ptr.vmem [resolvable:$true] %s190
          %196 = dma.hbm_to_vmem [thread:$0]  %s189, 256, %s191, %s180, 64, 64, 4
        $region24: #{tpu_custom_call.1} parent=15 // pred_fallthru
          _
        // Predicated region
        $region25: #{tpu_custom_call.1} parent=15 // pred_check
          %p197 = pneg %p104
        $region26: #{tpu_custom_call.1} parent=15 // pred_check_branch
          %199 = sbr.rel (%p197) target = $region28
        $region27: #{tpu_custom_call.1} parent=15 // pred_region
          %p200 = scmp.lt.s32.totalorder %s25, 1
          %s201 = scalar_select %p200, %s25, 1
          %s202 = scalar_lea.vmem %s2, %s201
        $region28: #{tpu_custom_call.1} parent=15 // pred_fallthru
          _
      $region16: #{tpu_custom_call.1} parent=5 // pred_fallthru
        _
      %p203 = scmp.le.s32.totalorder 1, %s18
      %p204 = scmp.lt.s32.totalorder %s18, 3
      %p205 = pnand %p203, %p204
      %p206 = pneg %p205
      // Predicated region
      $region29: #{tpu_custom_call.1} parent=5 // pred_check
        _
      $region30: #{tpu_custom_call.1} parent=5 // pred_check_branch
        %208 = sbr.rel (%p205) target = $region32
      $region31: #{tpu_custom_call.1} parent=5 // pred_region
        %s209 = ssub.s32 %s18, 1
        %s210 = sand.u32 %s45, 1
        %s211 = scalar_lea.sflag [#allocation3], %s210
        %s212 = sand.u32 %s45, 1
        %s213 = smul.addr %s212, 8
        %s214 = scalar_lea.vmem [#allocation2], %s213
        // Predicated region
        $region33: #{tpu_custom_call.1} parent=31 // pred_check
          %p215 = pneg %p58
        $region34: #{tpu_custom_call.1} parent=31 // pred_check_branch
          %217 = sbr.rel (%p215) target = $region36
        $region35: #{tpu_custom_call.1} parent=31 // pred_region
          %218 = dma.done %s211, 128
        $region36: #{tpu_custom_call.1} parent=31 // pred_fallthru
          _
        %s219 = sand.u32 %s71, 1
        %s220 = scalar_lea.sflag [#allocation6], %s219
        %s221 = sand.u32 %s71, 1
        %s222 = smul.addr %s221, 16
        %s223 = scalar_lea.vmem [#allocation5], %s222
        // Predicated region
        $region37: #{tpu_custom_call.1} parent=31 // pred_check
          %p224 = pneg %p84
        $region38: #{tpu_custom_call.1} parent=31 // pred_check_branch
          %226 = sbr.rel (%p224) target = $region40
        $region39: #{tpu_custom_call.1} parent=31 // pred_region
          %227 = dma.done %s220, 256
        $region40: #{tpu_custom_call.1} parent=31 // pred_fallthru
          _
        %s228 = sand.u32 %s45, 1
        %s229 = scalar_lea.sflag [#allocation3], %s228
        %s230 = sand.u32 %s45, 1
        %s231 = smul.addr %s230, 8
        %s232 = scalar_lea.vmem [#allocation2], %s231
        %p233 = pneg %p58
        %p234 = pneg %p55
        %s235 = sand.u32 %s71, 1
        %s236 = scalar_lea.sflag [#allocation6], %s235
        %s237 = sand.u32 %s71, 1
        %s238 = smul.addr %s237, 16
        %s239 = scalar_lea.vmem [#allocation5], %s238
        %p240 = pneg %p84
        %p241 = pneg %p81
        %p242 = scmp.lt.s32.totalorder %s27, 1
        %s243 = scalar_select %p242, %s27, 1
        %s244 = scalar_lea.vmem %s2, %s243
        %p245 = pneg %p110
        %p246 = pneg %p107
        %p247 = pneg %p138
        %p248 = pneg %p135
        %s249 = sand.u32 %s125, 1
        %s250 = scalar_lea.sflag [#allocation4], %s249
        %s251 = sand.u32 %s125, 1
        %s252 = smul.addr %s251, 8
        %s253 = scalar_lea.vmem [#allocation7], %s252
        %p254 = scmp.lt.s32.totalorder %s27, 1
        %s255 = scalar_select %p254, %s27, 1
        %s256 = scalar_lea.vmem %s2, %s255
        %v258 = vld [vmem:[%s214] sm:$0xff]
        %vm259 = vcmask 261120
        %v260 = vsel %vm259, %v258, 0.0
        %261 = vadd.xlane.f32.xlu0 %v260
        %v262 = vpop.xlane.xlu0 %261
        %v263 = vrcp.pop 32.0
        %v264 = vmul.f32 %v262, %v263
        %v265 = vsub.f32 %v258, %v264
        %v266 = vmul.f32 %v265, %v265
        %v267 = vsel %vm259, %v266, 0.0
        %268 = vadd.xlane.f32.xlu0 %v267
        %v269 = vpop.xlane.xlu0 %268
        %v270 = vmul.f32 %v269, %v263
        %v271 = vadd.f32 %v270, 1e-06
        %v272 = vrsqrt.pop %v271
        %v273 = vmul.f32 %v265, %v272
        %v274 = vpack.c.bf16 %v273, %v273
        %v275 = vld [vmem:[%s223] sm:$0xf]
        %v276 = vld [vmem:[%s223 + $0x4] sm:$0xf]
        %v277 = vld [vmem:[%s223 + $0x8] sm:$0xf]
        %v278 = vld [vmem:[%s223 + $0xc] sm:$0xf]
        %v279 = vld [vmem:[%s256] sm:$0x1]
        %v281 = vlaneseq
        %v282 = vshrl.u32 %v281, 7
        %v283 = vsub.s32 0, %v282
        %v284 = vrot.slane %v279, %v283
        %v290 = vunpack.c.l.b16 %v275
        %v291 = vunpack.c.l.b16 %v276
        %v292 = vunpack.c.l.b16 %v277
        %v293 = vunpack.c.l.b16 %v278
        %v294 = vpack.c.b16 %v291, %v290
        %v295 = vpack.c.b16 %v293, %v292
        %v299 = vsel %vm259, %v274, 0
        %301 = vmatprep.subr.bf16.mxu0 0
        %302 = vmatpush1.bf16.msra.mxu0 %v294
        %303 = vmatprep.subr.bf16.mxu0 0
        %304 = vmatpush1.bf16.msra.mxu0 %v295
        %305 = vmatprep.subr.bf16.mxu0 0
        %306 = vmatpush1.bf16.msra.mxu0 0
        %307 = vmatprep.subr.bf16.mxu0 0
        %308 = vmatpush1.bf16.msra.mxu0 0
        %309 = vmatprep.subr.bf16.mxu0 0
        %310 = vmatpush1.bf16.msra.mxu0 0
        %311 = vmatprep.subr.bf16.mxu0 0
        %312 = vmatpush1.bf16.msra.mxu0 0
        %313 = vmatprep.subr.bf16.mxu0 0
        %314 = vmatpush1.bf16.msra.mxu0 0
        %315 = vmatprep.subr.bf16.mxu0 0
        %316 = vmatpush1.bf16.msra.mxu0 0
        %317 = vmatprep.subr.bf16.mxu0 0
        %318 = vmatpush1.bf16.msra.mxu0 0
        %319 = vmatprep.subr.bf16.mxu0 0
        %320 = vmatpush1.bf16.msra.mxu0 0
        %321 = vmatprep.subr.bf16.mxu0 0
        %322 = vmatpush1.bf16.msra.mxu0 0
        %323 = vmatprep.subr.bf16.mxu0 0
        %324 = vmatpush1.bf16.msra.mxu0 0
        %325 = vmatprep.subr.bf16.mxu0 0
        %326 = vmatpush1.bf16.msra.mxu0 0
        %327 = vmatprep.subr.bf16.mxu0 0
        %328 = vmatpush1.bf16.msra.mxu0 0
        %329 = vmatprep.subr.bf16.mxu0 0
        %330 = vmatpush1.bf16.msra.mxu0 0
        %331 = vmatprep.subr.bf16.mxu0 0
        %332 = vmatpush1.bf16.msra.mxu0 0
        %333 = vmatprep.mubr.bf16.mxu0 0
        %334 = vmatmul.mubr.bf16.gmra.mrb[0].mxu0 %v299
        %v335 = vpop.f32.mrb[0].mxu0
        %v336 = vadd.f32 %v284, %v335
        %v337 = vpop.f32.mrb[0].mxu0
        %v338 = vpop.f32.mrb[0].mxu0
        %v339 = vpop.f32.mrb[0].mxu0
        %340 = vdwg.mxu0
        %341 = vst [vmem:[%s253] sm:$0xff] %v336
        %s342 = sand.u32 %s125, 1
        %s343 = scalar_lea.sflag [#allocation4], %s342
        %s344 = sand.u32 %s125, 1
        %s345 = smul.addr %s344, 8
        %s346 = scalar_lea.vmem [#allocation7], %s345
        // Predicated region
        $region41: #{tpu_custom_call.1} parent=31 // pred_check
          %p347 = pneg %p135
        $region42: #{tpu_custom_call.1} parent=31 // pred_check_branch
          %349 = sbr.rel (%p347) target = $region44
        $region43: #{tpu_custom_call.1} parent=31 // pred_region
          %s351 = ssub.s32 128, 128
          %352 = vsyncadd %s343, %s351
          %s353 = sadd.s32 %s28, %s27
          %s354 = smul.addr %s353, 128
          %s355 = scalar_lea.hbm %s3, %s354
          %s357 = sshll.u32 %s346, 4
          %s358 = int_to_ptr.vmem [resolvable:$true] %s357
          %360 = dma.vmem_to_hbm [thread:$0]  %s358, 128, %s355, %s343
        $region44: #{tpu_custom_call.1} parent=31 // pred_fallthru
          _
      $region32: #{tpu_custom_call.1} parent=5 // pred_fallthru
        _
      %p361 = scmp.le.s32.totalorder 2, %s18
      // Predicated region
      $region45: #{tpu_custom_call.1} parent=5 // pred_check
        %p362 = pneg %p361
      $region46: #{tpu_custom_call.1} parent=5 // pred_check_branch
        %364 = sbr.rel (%p362) target = $region48
      $region47: #{tpu_custom_call.1} parent=5 // pred_region
        %s365 = ssub.s32 %s18, 2
        // Predicated region
        $region49: #{tpu_custom_call.1} parent=47 // pred_check
          %p366 = pneg %p141
        $region50: #{tpu_custom_call.1} parent=47 // pred_check_branch
          %368 = sbr.rel (%p366) target = $region52
        $region51: #{tpu_custom_call.1} parent=47 // pred_region
          %s369 = sand.u32 %s126, 1
          %s370 = scalar_lea.sflag [#allocation4], %s369
          %s371 = sand.u32 %s126, 1
          %s372 = smul.addr %s371, 8
          %s373 = scalar_lea.vmem [#allocation7], %s372
          %374 = dma.done %s370, 128
        $region52: #{tpu_custom_call.1} parent=47 // pred_fallthru
          _
      $region48: #{tpu_custom_call.1} parent=5 // pred_fallthru
        _
    $region6: #{tpu_custom_call.1} parent=1 // loop_footer
      %s22 = sadd.s32 1, %s18
    $region7: #{tpu_custom_call.1} parent=1 // loop_footer_branch
      %17 = sbr.rel target = $region3
    $region8: #{tpu_custom_call.1} parent=1 // loop_exit
      _
    %375 = vsyncpa [#allocation3], 1
    %s376 = scalar_lea.sflag [#allocation3], 1
    %377 = vsyncpa %s376, 1
    %378 = vsyncpa [#allocation6], 1
    %s379 = scalar_lea.sflag [#allocation6], 1
    %380 = vsyncpa %s379, 1
    %381 = vsyncpa [#allocation4], 1
    %s382 = scalar_lea.sflag [#allocation4], 1
    %383 = vsyncpa %s382, 1

</llo_original>
